<compile_context>
chip_gen: v5e
topology: v5e:2x2
jax: 0.10.0
libtpu: 0.0.40
codegen_flags: <defaults>
</compile_context>

<pallas_src>
import functools

import jax
import jax.numpy as jnp
from jax import lax
from jax.experimental import pallas as pl
from jax.experimental.pallas import tpu as pltpu

LANE = 128


def _round_up(n, m):
    return ((n + m - 1) // m) * m


def _pad_to(a, shape):
    pads = [(0, t - s) for s, t in zip(a.shape, shape)]
    return jnp.pad(a, pads)


def rnn_kernel(x_ref, wih_t_ref, whh_t_ref, b_ref, wout_t_ref, bout_ref, h0_ref,
               y_ref, hn_ref, gx_ref, *, unroll):
    """Whole-sequence vanilla RNN + linear head in one kernel invocation."""
    seq = x_ref.shape[0]

    # (1) Batched input projection for ALL timesteps (one MXU matmul, hoisted
    #     off the serial recurrence): gx = x @ W_ih^T + (b_ih + b_hh) -> (seq, H)
    gx_ref[...] = (
        jnp.dot(x_ref[...], wih_t_ref[...], preferred_element_type=jnp.float32)
        + b_ref[...]
    )

    # Loop-invariant recurrent weight, hoisted out of the step body.
    whh_t = whh_t_ref[...]                                  # (H, H)
    mm_dtype = whh_t.dtype                                  # f32 or bf16 operands

    # (2) Serial recurrence. gx[t] is dead right after its read in step t, so
    #     h_t is written back in place -> one (seq, H) scratch serves as both
    #     the input projection and the hidden-state history. Carried h, bias
    #     add and tanh remain f32 (f32 MXU accumulation via preferred_element_type).
    def step(t, h):
        g = gx_ref[pl.ds(t, 1), :] + jnp.dot(
            h.astype(mm_dtype), whh_t, preferred_element_type=jnp.float32)
        h_new = jnp.tanh(g)                                 # (1, H) f32
        gx_ref[pl.ds(t, 1), :] = h_new                      # lane-dense store
        return h_new

    h_fin = lax.fori_loop(0, seq, step, h0_ref[...], unroll=unroll)
    hn_ref[...] = h_fin

    # (3) Batched output head (hoisted): one (seq, H)@(H, input) matmul + bias,
    #     single lane-dense store of y.
    y_ref[...] = (
        jnp.dot(gx_ref[...].astype(wout_t_ref.dtype), wout_t_ref[...],
                preferred_element_type=jnp.float32)
        + bout_ref[...]
    ).astype(y_ref.dtype)


def rnn_module_forward(x, params, h0, *, matmul_dtype=jnp.float32, unroll=8):
    """params use PyTorch nn.RNN / nn.Linear conventions; transposed + padded here."""
    seq, input_size = x.shape
    hidden = params["w_hh"].shape[0]

    hp = _round_up(hidden, LANE)
    ip = _round_up(input_size, LANE)

    # Zero-pad lane dims to 128 (exact: padded h lanes stay tanh(0)=0 forever,
    # and padded weight rows/cols + biases are zero). Makes every vector store
    # in the kernel unmasked (lane-dense).
    x_p    = _pad_to(x, (seq, ip)).astype(matmul_dtype)
    wih_t  = _pad_to(params["w_ih"].T, (ip, hp)).astype(matmul_dtype)   # (Ip, Hp)
    whh_t  = _pad_to(params["w_hh"].T, (hp, hp)).astype(matmul_dtype)   # (Hp, Hp)
    b      = _pad_to((params["b_ih"] + params["b_hh"]).reshape(1, hidden),
                     (1, hp)).astype(jnp.float32)
    wout_t = _pad_to(params["w_out"].T, (hp, ip)).astype(matmul_dtype)  # (Hp, Ip)
    bout   = _pad_to(params["b_out"].reshape(1, input_size),
                     (1, ip)).astype(jnp.float32)
    h0_p   = _pad_to(h0.reshape(1, hidden), (1, hp)).astype(jnp.float32)

    vmem = pl.BlockSpec(memory_space=pltpu.MemorySpace.VMEM)
    y_p, hn_p = pl.pallas_call(
        functools.partial(rnn_kernel, unroll=unroll),
        out_shape=(
            jax.ShapeDtypeStruct((seq, ip), jnp.float32),
            jax.ShapeDtypeStruct((1, hp), jnp.float32),
        ),
        in_specs=[vmem] * 7,
        out_specs=(vmem, vmem),
        scratch_shapes=[
            pltpu.VMEM((seq, hp), jnp.float32),  # gx, reused as h history
        ],
    )(x_p, wih_t, whh_t, b, wout_t, bout, h0_p)

    # Strip lane padding; match PyTorch return convention (output, hidden(1,1,H)).
    y = y_p[:, :input_size]
    h_n = hn_p[:, :hidden].reshape(1, 1, hidden)
    return y, h_n


def _reference(x, params, h0):
    """Pure-JAX reference of the PyTorch RNNModule forward (for verification)."""
    seq, _ = x.shape
    H = params["w_hh"].shape[0]
    h = h0.reshape(1, H)
    b = params["b_ih"] + params["b_hh"]
    ys = []
    for t in range(seq):
        h = jnp.tanh(x[t:t + 1] @ params["w_ih"].T + h @ params["w_hh"].T + b)
        ys.append(h @ params["w_out"].T + params["b_out"])
    return jnp.concatenate(ys, axis=0), h


if __name__ == "__main__":
    seq, input_size, hidden = 8, 16, 32

    key = jax.random.PRNGKey(0)
    k = jax.random.split(key, 8)
    bound = 1.0 / jnp.sqrt(hidden)

    # Deterministic synthetic parameters (PyTorch nn.RNN / nn.Linear shapes).
    params = {
        "w_ih":  jax.random.uniform(k[0], (hidden, input_size), jnp.float32, -bound, bound),
        "w_hh":  jax.random.uniform(k[1], (hidden, hidden), jnp.float32, -bound, bound),
        "b_ih":  jax.random.uniform(k[2], (hidden,), jnp.float32, -bound, bound),
        "b_hh":  jax.random.uniform(k[3], (hidden,), jnp.float32, -bound, bound),
        "w_out": jax.random.uniform(k[4], (input_size, hidden), jnp.float32, -bound, bound),
        "b_out": jax.random.uniform(k[5], (input_size,), jnp.float32, -bound, bound),
    }

    x = jax.random.normal(k[6], (seq, input_size), jnp.float32)
    # Deterministic stand-in for the module's torch.rand default hidden state.
    h0 = jax.random.uniform(k[7], (1, 1, hidden), jnp.float32)

    # f32 run: must match the PyTorch recurrence exactly.
    y, h_n = rnn_module_forward(x, params, h0)
    jax.block_until_ready((y, h_n))

    y_ref, h_ref = _reference(x, params, h0)
    assert jnp.allclose(y, y_ref, atol=1e-5, rtol=1e-5)
    assert jnp.allclose(h_n.reshape(1, hidden), h_ref, atol=1e-5, rtol=1e-5)

    # bf16 MXU-operand mode (v6e/v7x recommendation): f32 accumulation and f32
    # recurrent state, so only a small drift from operand rounding is expected.
    y_bf, h_bf = rnn_module_forward(x, params, h0, matmul_dtype=jnp.bfloat16)
    jax.block_until_ready((y_bf, h_bf))
    assert jnp.allclose(y_bf, y_ref, atol=5e-2, rtol=5e-2)
    assert jnp.allclose(h_bf.reshape(1, hidden), h_ref, atol=5e-2, rtol=5e-2)

    print("KERNEL_OK")
</pallas_src>

<mosaic_0001>
module attributes {stable_mosaic.version = 11 : i64} {
  func.func @rnn_kernel(%arg0: memref<8x128xf32, #tpu.memory_space<vmem>>, %arg1: memref<128x128xf32, #tpu.memory_space<vmem>>, %arg2: memref<128x128xf32, #tpu.memory_space<vmem>>, %arg3: memref<1x128xf32, #tpu.memory_space<vmem>>, %arg4: memref<128x128xf32, #tpu.memory_space<vmem>>, %arg5: memref<1x128xf32, #tpu.memory_space<vmem>>, %arg6: memref<1x128xf32, #tpu.memory_space<vmem>>, %arg7: memref<8x128xf32, #tpu.memory_space<vmem>>, %arg8: memref<1x128xf32, #tpu.memory_space<vmem>>, %arg9: memref<8x128xf32, #tpu.memory_space<vmem>>) attributes {dimension_semantics = [], scalar_prefetch = 0 : i64, scratch_operands = 1 : i64, tpu.core_type = #tpu.core_type<tc>} {
    %c0 = arith.constant 0 : index
    %c0_0 = arith.constant 0 : index
    %0 = vector.load %arg0[%c0, %c0_0] : memref<8x128xf32, #tpu.memory_space<vmem>>, vector<8x128xf32>
    %c0_1 = arith.constant 0 : index
    %c0_2 = arith.constant 0 : index
    %1 = vector.load %arg1[%c0_1, %c0_2] : memref<128x128xf32, #tpu.memory_space<vmem>>, vector<128x128xf32>
    %cst = arith.constant dense<0.000000e+00> : vector<8x128xf32>
    %2 = tpu.matmul %0, %1, %cst {dimension_numbers = #tpu.dot_dimension_numbers<[1], [0], [0], [1], [0, 0, 1, 1], [], []>} : vector<8x128xf32>, vector<128x128xf32>, vector<8x128xf32> -> vector<8x128xf32>
    %c0_3 = arith.constant 0 : index
    %c0_4 = arith.constant 0 : index
    %3 = vector.load %arg3[%c0_3, %c0_4] : memref<1x128xf32, #tpu.memory_space<vmem>>, vector<1x128xf32>
    %4 = vector.broadcast %3 : vector<1x128xf32> to vector<8x128xf32>
    %5 = arith.addf %2, %4 : vector<8x128xf32>
    %c0_5 = arith.constant 0 : index
    %c0_6 = arith.constant 0 : index
    %6 = vector.load %arg9[%c0_5, %c0_6] : memref<8x128xf32, #tpu.memory_space<vmem>>, vector<8x128xf32>
    tpu.vector_store %arg9[%c0_5, %c0_6], %5 {strides = array<i32>} : memref<8x128xf32, #tpu.memory_space<vmem>>, vector<8x128xf32>,
    %c0_7 = arith.constant 0 : index
    %c0_8 = arith.constant 0 : index
    %7 = vector.load %arg2[%c0_7, %c0_8] : memref<128x128xf32, #tpu.memory_space<vmem>>, vector<128x128xf32>
    %c0_9 = arith.constant 0 : index
    %c0_10 = arith.constant 0 : index
    %8 = vector.load %arg6[%c0_9, %c0_10] : memref<1x128xf32, #tpu.memory_space<vmem>>, vector<1x128xf32>
    %c0_i32 = arith.constant 0 : i32
    %9 = arith.index_cast %c0_i32 : i32 to index
    %c0_11 = arith.constant 0 : index
    %10 = vector.load %arg9[%9, %c0_11] : memref<8x128xf32, #tpu.memory_space<vmem>>, vector<1x128xf32>
    %cst_12 = arith.constant dense<0.000000e+00> : vector<1x128xf32>
    %11 = tpu.matmul %8, %7, %cst_12 {dimension_numbers = #tpu.dot_dimension_numbers<[1], [0], [0], [1], [0, 0, 1, 1], [], []>} : vector<1x128xf32>, vector<128x128xf32>, vector<1x128xf32> -> vector<1x128xf32>
    %12 = arith.addf %10, %11 : vector<1x128xf32>
    %13 = math.tanh %12 : vector<1x128xf32>
    %14 = arith.index_cast %c0_i32 : i32 to index
    %c0_13 = arith.constant 0 : index
    %15 = vector.load %arg9[%14, %c0_13] : memref<8x128xf32, #tpu.memory_space<vmem>>, vector<1x128xf32>
    tpu.vector_store %arg9[%14, %c0_13], %13 {strides = array<i32>} : memref<8x128xf32, #tpu.memory_space<vmem>>, vector<1x128xf32>,
    %c1_i32 = arith.constant 1 : i32
    %16 = arith.index_cast %c1_i32 : i32 to index
    %c0_14 = arith.constant 0 : index
    %17 = vector.load %arg9[%16, %c0_14] : memref<8x128xf32, #tpu.memory_space<vmem>>, vector<1x128xf32>
    %cst_15 = arith.constant dense<0.000000e+00> : vector<1x128xf32>
    %18 = tpu.matmul %13, %7, %cst_15 {dimension_numbers = #tpu.dot_dimension_numbers<[1], [0], [0], [1], [0, 0, 1, 1], [], []>} : vector<1x128xf32>, vector<128x128xf32>, vector<1x128xf32> -> vector<1x128xf32>
    %19 = arith.addf %17, %18 : vector<1x128xf32>
    %20 = math.tanh %19 : vector<1x128xf32>
    %21 = arith.index_cast %c1_i32 : i32 to index
    %c0_16 = arith.constant 0 : index
    %22 = vector.load %arg9[%21, %c0_16] : memref<8x128xf32, #tpu.memory_space<vmem>>, vector<1x128xf32>
    tpu.vector_store %arg9[%21, %c0_16], %20 {strides = array<i32>} : memref<8x128xf32, #tpu.memory_space<vmem>>, vector<1x128xf32>,
    %c2_i32 = arith.constant 2 : i32
    %23 = arith.index_cast %c2_i32 : i32 to index
    %c0_17 = arith.constant 0 : index
    %24 = vector.load %arg9[%23, %c0_17] : memref<8x128xf32, #tpu.memory_space<vmem>>, vector<1x128xf32>
    %cst_18 = arith.constant dense<0.000000e+00> : vector<1x128xf32>
    %25 = tpu.matmul %20, %7, %cst_18 {dimension_numbers = #tpu.dot_dimension_numbers<[1], [0], [0], [1], [0, 0, 1, 1], [], []>} : vector<1x128xf32>, vector<128x128xf32>, vector<1x128xf32> -> vector<1x128xf32>
    %26 = arith.addf %24, %25 : vector<1x128xf32>
    %27 = math.tanh %26 : vector<1x128xf32>
    %28 = arith.index_cast %c2_i32 : i32 to index
    %c0_19 = arith.constant 0 : index
    %29 = vector.load %arg9[%28, %c0_19] : memref<8x128xf32, #tpu.memory_space<vmem>>, vector<1x128xf32>
    tpu.vector_store %arg9[%28, %c0_19], %27 {strides = array<i32>} : memref<8x128xf32, #tpu.memory_space<vmem>>, vector<1x128xf32>,
    %c3_i32 = arith.constant 3 : i32
    %30 = arith.index_cast %c3_i32 : i32 to index
    %c0_20 = arith.constant 0 : index
    %31 = vector.load %arg9[%30, %c0_20] : memref<8x128xf32, #tpu.memory_space<vmem>>, vector<1x128xf32>
    %cst_21 = arith.constant dense<0.000000e+00> : vector<1x128xf32>
    %32 = tpu.matmul %27, %7, %cst_21 {dimension_numbers = #tpu.dot_dimension_numbers<[1], [0], [0], [1], [0, 0, 1, 1], [], []>} : vector<1x128xf32>, vector<128x128xf32>, vector<1x128xf32> -> vector<1x128xf32>
    %33 = arith.addf %31, %32 : vector<1x128xf32>
    %34 = math.tanh %33 : vector<1x128xf32>
    %35 = arith.index_cast %c3_i32 : i32 to index
    %c0_22 = arith.constant 0 : index
    %36 = vector.load %arg9[%35, %c0_22] : memref<8x128xf32, #tpu.memory_space<vmem>>, vector<1x128xf32>
    tpu.vector_store %arg9[%35, %c0_22], %34 {strides = array<i32>} : memref<8x128xf32, #tpu.memory_space<vmem>>, vector<1x128xf32>,
    %c4_i32 = arith.constant 4 : i32
    %37 = arith.index_cast %c4_i32 : i32 to index
    %c0_23 = arith.constant 0 : index
    %38 = vector.load %arg9[%37, %c0_23] : memref<8x128xf32, #tpu.memory_space<vmem>>, vector<1x128xf32>
    %cst_24 = arith.constant dense<0.000000e+00> : vector<1x128xf32>
    %39 = tpu.matmul %34, %7, %cst_24 {dimension_numbers = #tpu.dot_dimension_numbers<[1], [0], [0], [1], [0, 0, 1, 1], [], []>} : vector<1x128xf32>, vector<128x128xf32>, vector<1x128xf32> -> vector<1x128xf32>
    %40 = arith.addf %38, %39 : vector<1x128xf32>
    %41 = math.tanh %40 : vector<1x128xf32>
    %42 = arith.index_cast %c4_i32 : i32 to index
    %c0_25 = arith.constant 0 : index
    %43 = vector.load %arg9[%42, %c0_25] : memref<8x128xf32, #tpu.memory_space<vmem>>, vector<1x128xf32>
    tpu.vector_store %arg9[%42, %c0_25], %41 {strides = array<i32>} : memref<8x128xf32, #tpu.memory_space<vmem>>, vector<1x128xf32>,
    %c5_i32 = arith.constant 5 : i32
    %44 = arith.index_cast %c5_i32 : i32 to index
    %c0_26 = arith.constant 0 : index
    %45 = vector.load %arg9[%44, %c0_26] : memref<8x128xf32, #tpu.memory_space<vmem>>, vector<1x128xf32>
    %cst_27 = arith.constant dense<0.000000e+00> : vector<1x128xf32>
    %46 = tpu.matmul %41, %7, %cst_27 {dimension_numbers = #tpu.dot_dimension_numbers<[1], [0], [0], [1], [0, 0, 1, 1], [], []>} : vector<1x128xf32>, vector<128x128xf32>, vector<1x128xf32> -> vector<1x128xf32>
    %47 = arith.addf %45, %46 : vector<1x128xf32>
    %48 = math.tanh %47 : vector<1x128xf32>
    %49 = arith.index_cast %c5_i32 : i32 to index
    %c0_28 = arith.constant 0 : index
    %50 = vector.load %arg9[%49, %c0_28] : memref<8x128xf32, #tpu.memory_space<vmem>>, vector<1x128xf32>
    tpu.vector_store %arg9[%49, %c0_28], %48 {strides = array<i32>} : memref<8x128xf32, #tpu.memory_space<vmem>>, vector<1x128xf32>,
    %c6_i32 = arith.constant 6 : i32
    %51 = arith.index_cast %c6_i32 : i32 to index
    %c0_29 = arith.constant 0 : index
    %52 = vector.load %arg9[%51, %c0_29] : memref<8x128xf32, #tpu.memory_space<vmem>>, vector<1x128xf32>
    %cst_30 = arith.constant dense<0.000000e+00> : vector<1x128xf32>
    %53 = tpu.matmul %48, %7, %cst_30 {dimension_numbers = #tpu.dot_dimension_numbers<[1], [0], [0], [1], [0, 0, 1, 1], [], []>} : vector<1x128xf32>, vector<128x128xf32>, vector<1x128xf32> -> vector<1x128xf32>
    %54 = arith.addf %52, %53 : vector<1x128xf32>
    %55 = math.tanh %54 : vector<1x128xf32>
    %56 = arith.index_cast %c6_i32 : i32 to index
    %c0_31 = arith.constant 0 : index
    %57 = vector.load %arg9[%56, %c0_31] : memref<8x128xf32, #tpu.memory_space<vmem>>, vector<1x128xf32>
    tpu.vector_store %arg9[%56, %c0_31], %55 {strides = array<i32>} : memref<8x128xf32, #tpu.memory_space<vmem>>, vector<1x128xf32>,
    %c7_i32 = arith.constant 7 : i32
    %58 = arith.index_cast %c7_i32 : i32 to index
    %c0_32 = arith.constant 0 : index
    %59 = vector.load %arg9[%58, %c0_32] : memref<8x128xf32, #tpu.memory_space<vmem>>, vector<1x128xf32>
    %cst_33 = arith.constant dense<0.000000e+00> : vector<1x128xf32>
    %60 = tpu.matmul %55, %7, %cst_33 {dimension_numbers = #tpu.dot_dimension_numbers<[1], [0], [0], [1], [0, 0, 1, 1], [], []>} : vector<1x128xf32>, vector<128x128xf32>, vector<1x128xf32> -> vector<1x128xf32>
    %61 = arith.addf %59, %60 : vector<1x128xf32>
    %62 = math.tanh %61 : vector<1x128xf32>
    %63 = arith.index_cast %c7_i32 : i32 to index
    %c0_34 = arith.constant 0 : index
    %64 = vector.load %arg9[%63, %c0_34] : memref<8x128xf32, #tpu.memory_space<vmem>>, vector<1x128xf32>
    tpu.vector_store %arg9[%63, %c0_34], %62 {strides = array<i32>} : memref<8x128xf32, #tpu.memory_space<vmem>>, vector<1x128xf32>,
    %c8_i32 = arith.constant 8 : i32
    %c0_35 = arith.constant 0 : index
    %c0_36 = arith.constant 0 : index
    %65 = vector.load %arg8[%c0_35, %c0_36] : memref<1x128xf32, #tpu.memory_space<vmem>>, vector<1x128xf32>
    tpu.vector_store %arg8[%c0_35, %c0_36], %62 {strides = array<i32>} : memref<1x128xf32, #tpu.memory_space<vmem>>, vector<1x128xf32>,
    %c0_37 = arith.constant 0 : index
    %c0_38 = arith.constant 0 : index
    %66 = vector.load %arg9[%c0_37, %c0_38] : memref<8x128xf32, #tpu.memory_space<vmem>>, vector<8x128xf32>
    %c0_39 = arith.constant 0 : index
    %c0_40 = arith.constant 0 : index
    %67 = vector.load %arg4[%c0_39, %c0_40] : memref<128x128xf32, #tpu.memory_space<vmem>>, vector<128x128xf32>
    %cst_41 = arith.constant dense<0.000000e+00> : vector<8x128xf32>
    %68 = tpu.matmul %66, %67, %cst_41 {dimension_numbers = #tpu.dot_dimension_numbers<[1], [0], [0], [1], [0, 0, 1, 1], [], []>} : vector<8x128xf32>, vector<128x128xf32>, vector<8x128xf32> -> vector<8x128xf32>
    %c0_42 = arith.constant 0 : index
    %c0_43 = arith.constant 0 : index
    %69 = vector.load %arg5[%c0_42, %c0_43] : memref<1x128xf32, #tpu.memory_space<vmem>>, vector<1x128xf32>
    %70 = vector.broadcast %69 : vector<1x128xf32> to vector<8x128xf32>
    %71 = arith.addf %68, %70 : vector<8x128xf32>
    %c0_44 = arith.constant 0 : index
    %c0_45 = arith.constant 0 : index
    %72 = vector.load %arg7[%c0_44, %c0_45] : memref<8x128xf32, #tpu.memory_space<vmem>>, vector<8x128xf32>
    tpu.vector_store %arg7[%c0_44, %c0_45], %71 {strides = array<i32>} : memref<8x128xf32, #tpu.memory_space<vmem>>, vector<8x128xf32>,
    return
  }
}

</mosaic_0001>

<llo_original>
// kernel: tpu_custom_call.1
$region0: #{tpu_custom_call.1}
  #allocation0 [shape = 'u32[]', space=smem, size = 0x4, offset = 0x4, fixed_abs, tag = 'smem constant byte address 0x4 - core index']
  #allocation1 [shape = 'u32[72,128]{1,0:T(1,128)}', space=vmem, size = 0x9000, scoped, tag = 'internal scratch']
  #allocation2 [shape = 'f32[8,128]{1,0:T(8,128)}', space=vmem, size = 0x1000, scoped, tag = 'scratch operand']
  %s0 = inlined_call_operand.hbm [shape: f32[8,128], index: 0, kind: input, shape index: {}]
  %s1 = inlined_call_operand.hbm [shape: f32[128,128], index: 1, kind: input, shape index: {}]
  %s2 = inlined_call_operand.hbm [shape: f32[128,128], index: 2, kind: input, shape index: {}]
  %s3 = inlined_call_operand.vmem [shape: f32[1,128], index: 3, kind: input, shape index: {}]
  %s4 = inlined_call_operand.hbm [shape: f32[128,128], index: 4, kind: input, shape index: {}]
  %s5 = inlined_call_operand.vmem [shape: f32[1,128], index: 5, kind: input, shape index: {}]
  %s6 = inlined_call_operand.vmem [shape: f32[1,128], index: 6, kind: input, shape index: {}]
  %s7 = inlined_call_operand.hbm [shape: f32[8,128], index: 7, kind: output, shape index: {0}]
  %s8 = inlined_call_operand.hbm [shape: f32[1,128], index: 8, kind: output, shape index: {1}]
  %9 = xla_tuple %s7, %s8
  %s10 = sld [smem:[#allocation0]]
  $region62: #{tpu_custom_call.1} parent=0
    _
  %s12 = ssub.s32 1, %s10
  %s13 = scalar_select 0, %s12, %s10
  $region1: #{tpu_custom_call.1} parent=0
    #allocation3 [shape = 'u8[4096]{0}', space=vmem, size = 0x1000, scoped, tag = 'input window, operand 0, single buffered']
    #allocation4 [shape = 's32[1]{0}', space=sflag, size = 0x4, scoped, tag = 'scoped memory for tpu_custom_call.1']
    #allocation5 [shape = 's32[1]{0}', space=sflag, size = 0x4, scoped, tag = 'scoped memory for tpu_custom_call.1']
    #allocation6 [shape = 'u8[65536]{0}', space=vmem, size = 0x10000, scoped, tag = 'input window, operand 1, single buffered']
    #allocation7 [shape = 's32[1]{0}', space=sflag, size = 0x4, scoped, tag = 'scoped memory for tpu_custom_call.1']
    #allocation8 [shape = 'u8[65536]{0}', space=vmem, size = 0x10000, scoped, tag = 'input window, operand 2, single buffered']
    #allocation9 [shape = 'u8[65536]{0}', space=vmem, size = 0x10000, scoped, tag = 'input window, operand 4, single buffered']
    #allocation10 [shape = 's32[1]{0}', space=sflag, size = 0x4, scoped, tag = 'scoped memory for tpu_custom_call.1']
    #allocation11 [shape = 'u8[4096]{0}', space=vmem, size = 0x1000, scoped, tag = 'output window, operand 0, single buffered']
    #allocation12 [shape = 'u8[512]{0}', space=vmem, size = 0x400, scoped, tag = 'output window, operand 1, single buffered']
    #allocation13 [shape = 's32[1]{0}', space=sflag, size = 0x4, scoped, tag = 'scoped memory for tpu_custom_call.1']
    %14 = vsyncpa [#allocation4], 0
    %15 = vsyncpa [#allocation7], 0
    %16 = vsyncpa [#allocation10], 0
    %17 = vsyncpa [#allocation5], 0
    %18 = vsyncpa [#allocation13], 0
    // Predicated region
    $region2: #{tpu_custom_call.1} parent=1 // pred_check
      _
    $region3: #{tpu_custom_call.1} parent=1 // pred_check_branch
      %20 = sbr.rel (0) target = $region5
    $region4: #{tpu_custom_call.1} parent=1 // pred_region
      %22 = vsyncadd [#allocation4], 0
      %s24 = sshll.u32 %s0, 4
      %s25 = int_to_ptr.hbm [resolvable:$true] %s24
      %s26 = sshll.u32 [#allocation3], 4
      %s27 = int_to_ptr.vmem [resolvable:$true] %s26
      %29 = dma.hbm_to_vmem [thread:$0]  %s25, 128, %s27, [#allocation4]
    $region5: #{tpu_custom_call.1} parent=1 // pred_fallthru
      _
    // Predicated region
    $region6: #{tpu_custom_call.1} parent=1 // pred_check
      _
    $region7: #{tpu_custom_call.1} parent=1 // pred_check_branch
      %31 = sbr.rel (0) target = $region9
    $region8: #{tpu_custom_call.1} parent=1 // pred_region
      %33 = vsyncadd [#allocation7], 0
      %s34 = sshll.u32 %s1, 4
      %s35 = int_to_ptr.hbm [resolvable:$true] %s34
      %s36 = sshll.u32 [#allocation6], 4
      %s37 = int_to_ptr.vmem [resolvable:$true] %s36
      %42 = dma.hbm_to_vmem [thread:$0]  %s35, 2048, %s37, [#allocation7], 128, 128, 8
    $region9: #{tpu_custom_call.1} parent=1 // pred_fallthru
      _
    // Predicated region
    $region10: #{tpu_custom_call.1} parent=1 // pred_check
      _
    $region11: #{tpu_custom_call.1} parent=1 // pred_check_branch
      %44 = sbr.rel (0) target = $region13
    $region12: #{tpu_custom_call.1} parent=1 // pred_region
      %46 = vsyncadd [#allocation7], 0
      %s47 = sshll.u32 %s2, 4
      %s48 = int_to_ptr.hbm [resolvable:$true] %s47
      %s49 = sshll.u32 [#allocation8], 4
      %s50 = int_to_ptr.vmem [resolvable:$true] %s49
      %55 = dma.hbm_to_vmem [thread:$0]  %s48, 2048, %s50, [#allocation7], 128, 128, 8
    $region13: #{tpu_custom_call.1} parent=1 // pred_fallthru
      _
    // Predicated region
    $region14: #{tpu_custom_call.1} parent=1 // pred_check
      _
    $region15: #{tpu_custom_call.1} parent=1 // pred_check_branch
      %57 = sbr.rel (0) target = $region17
    $region16: #{tpu_custom_call.1} parent=1 // pred_region
      _
    $region17: #{tpu_custom_call.1} parent=1 // pred_fallthru
      _
    // Predicated region
    $region18: #{tpu_custom_call.1} parent=1 // pred_check
      _
    $region19: #{tpu_custom_call.1} parent=1 // pred_check_branch
      %59 = sbr.rel (0) target = $region21
    $region20: #{tpu_custom_call.1} parent=1 // pred_region
      %61 = vsyncadd [#allocation10], 0
      %s62 = sshll.u32 %s4, 4
      %s63 = int_to_ptr.hbm [resolvable:$true] %s62
      %s64 = sshll.u32 [#allocation9], 4
      %s65 = int_to_ptr.vmem [resolvable:$true] %s64
      %70 = dma.hbm_to_vmem [thread:$0]  %s63, 2048, %s65, [#allocation10], 128, 128, 8
    $region21: #{tpu_custom_call.1} parent=1 // pred_fallthru
      _
    // Predicated region
    $region22: #{tpu_custom_call.1} parent=1 // pred_check
      _
    $region23: #{tpu_custom_call.1} parent=1 // pred_check_branch
      %72 = sbr.rel (0) target = $region25
    $region24: #{tpu_custom_call.1} parent=1 // pred_region
      _
    $region25: #{tpu_custom_call.1} parent=1 // pred_fallthru
      _
    // Predicated region
    $region26: #{tpu_custom_call.1} parent=1 // pred_check
      _
    $region27: #{tpu_custom_call.1} parent=1 // pred_check_branch
      %74 = sbr.rel (0) target = $region29
    $region28: #{tpu_custom_call.1} parent=1 // pred_region
      _
    $region29: #{tpu_custom_call.1} parent=1 // pred_fallthru
      _
    // Predicated region
    $region30: #{tpu_custom_call.1} parent=1 // pred_check
      _
    $region31: #{tpu_custom_call.1} parent=1 // pred_check_branch
      %76 = sbr.rel (0) target = $region33
    $region32: #{tpu_custom_call.1} parent=1 // pred_region
      %78 = dma.done [#allocation4], 128
    $region33: #{tpu_custom_call.1} parent=1 // pred_fallthru
      _
    // Predicated region
    $region34: #{tpu_custom_call.1} parent=1 // pred_check
      _
    $region35: #{tpu_custom_call.1} parent=1 // pred_check_branch
      %80 = sbr.rel (0) target = $region37
    $region36: #{tpu_custom_call.1} parent=1 // pred_region
      %82 = dma.done [#allocation7], 2048
    $region37: #{tpu_custom_call.1} parent=1 // pred_fallthru
      _
    // Predicated region
    $region38: #{tpu_custom_call.1} parent=1 // pred_check
      _
    $region39: #{tpu_custom_call.1} parent=1 // pred_check_branch
      %84 = sbr.rel (0) target = $region41
    $region40: #{tpu_custom_call.1} parent=1 // pred_region
      %86 = dma.done [#allocation7], 2048
    $region41: #{tpu_custom_call.1} parent=1 // pred_fallthru
      _
    // Predicated region
    $region42: #{tpu_custom_call.1} parent=1 // pred_check
      _
    $region43: #{tpu_custom_call.1} parent=1 // pred_check_branch
      %88 = sbr.rel (0) target = $region45
    $region44: #{tpu_custom_call.1} parent=1 // pred_region
      %90 = dma.done [#allocation10], 2048
    $region45: #{tpu_custom_call.1} parent=1 // pred_fallthru
      _
    %v91 = vld [vmem:[#allocation3] sm:$0xff]
    %v92 = vld [vmem:[#allocation6] sm:$0xff]
    %v93 = vld [vmem:[#allocation6 + $0x8] sm:$0xff]
    %v94 = vld [vmem:[#allocation6 + $0x10] sm:$0xff]
    %v95 = vld [vmem:[#allocation6 + $0x18] sm:$0xff]
    %v96 = vld [vmem:[#allocation6 + $0x20] sm:$0xff]
    %v97 = vld [vmem:[#allocation6 + $0x28] sm:$0xff]
    %v98 = vld [vmem:[#allocation6 + $0x30] sm:$0xff]
    %v99 = vld [vmem:[#allocation6 + $0x38] sm:$0xff]
    %v100 = vld [vmem:[#allocation6 + $0x40] sm:$0xff]
    %v101 = vld [vmem:[#allocation6 + $0x48] sm:$0xff]
    %v102 = vld [vmem:[#allocation6 + $0x50] sm:$0xff]
    %v103 = vld [vmem:[#allocation6 + $0x58] sm:$0xff]
    %v104 = vld [vmem:[#allocation6 + $0x60] sm:$0xff]
    %v105 = vld [vmem:[#allocation6 + $0x68] sm:$0xff]
    %v106 = vld [vmem:[#allocation6 + $0x70] sm:$0xff]
    %v107 = vld [vmem:[#allocation6 + $0x78] sm:$0xff]
    %v108 = vld [vmem:[%s3] sm:$0x1]
    %v110 = vperm.slane %v108, 0
    %112 = vmatpush.msra.mxu0 %v107
    %113 = vmatpush.msra.mxu0 %v106
    %114 = vmatpush.msra.mxu0 %v105
    %115 = vmatpush.msra.mxu0 %v104
    %116 = vmatpush.msra.mxu0 %v103
    %117 = vmatpush.msra.mxu0 %v102
    %118 = vmatpush.msra.mxu0 %v101
    %119 = vmatpush.msra.mxu0 %v100
    %120 = vmatpush.msra.mxu0 %v99
    %121 = vmatpush.msra.mxu0 %v98
    %122 = vmatpush.msra.mxu0 %v97
    %123 = vmatpush.msra.mxu0 %v96
    %124 = vmatpush.msra.mxu0 %v95
    %125 = vmatpush.msra.mxu0 %v94
    %126 = vmatpush.msra.mxu0 %v93
    %127 = vmatpush.msra.mxu0 %v92
    %128 = vmatmul.f32.gmra.mxu0 %v91
    %v129 = vpop.f32.mrf.mxu0
    %v130 = vadd.f32 %v110, %v129
    %131 = vdwg.mxu0
    %132 = vst [vmem:[#allocation2] sm:$0xff] %v130
    %v133 = vld [vmem:[#allocation8] sm:$0xff]
    %v134 = vld [vmem:[#allocation8 + $0x8] sm:$0xff]
    %v135 = vld [vmem:[#allocation8 + $0x10] sm:$0xff]
    %v136 = vld [vmem:[#allocation8 + $0x18] sm:$0xff]
    %v137 = vld [vmem:[#allocation8 + $0x20] sm:$0xff]
    %v138 = vld [vmem:[#allocation8 + $0x28] sm:$0xff]
    %v139 = vld [vmem:[#allocation8 + $0x30] sm:$0xff]
    %v140 = vld [vmem:[#allocation8 + $0x38] sm:$0xff]
    %v141 = vld [vmem:[#allocation8 + $0x40] sm:$0xff]
    %v142 = vld [vmem:[#allocation8 + $0x48] sm:$0xff]
    %v143 = vld [vmem:[#allocation8 + $0x50] sm:$0xff]
    %v144 = vld [vmem:[#allocation8 + $0x58] sm:$0xff]
    %v145 = vld [vmem:[#allocation8 + $0x60] sm:$0xff]
    %v146 = vld [vmem:[#allocation8 + $0x68] sm:$0xff]
    %v147 = vld [vmem:[#allocation8 + $0x70] sm:$0xff]
    %v148 = vld [vmem:[#allocation8 + $0x78] sm:$0xff]
    %v149 = vld [vmem:[%s6] sm:$0x1]
    %v150 = vld [vmem:[#allocation2] sm:$0x1]
    %151 = vmatpush.msra.mxu0 %v148
    %152 = vmatpush.msra.mxu0 %v147
    %153 = vmatpush.msra.mxu0 %v146
    %154 = vmatpush.msra.mxu0 %v145
    %155 = vmatpush.msra.mxu0 %v144
    %156 = vmatpush.msra.mxu0 %v143
    %157 = vmatpush.msra.mxu0 %v142
    %158 = vmatpush.msra.mxu0 %v141
    %159 = vmatpush.msra.mxu0 %v140
    %160 = vmatpush.msra.mxu0 %v139
    %161 = vmatpush.msra.mxu0 %v138
    %162 = vmatpush.msra.mxu0 %v137
    %163 = vmatpush.msra.mxu0 %v136
    %164 = vmatpush.msra.mxu0 %v135
    %165 = vmatpush.msra.mxu0 %v134
    %166 = vmatpush.msra.mxu0 %v133
    %167 = vmatmul.f32.gmra.mxu0 %v149
    %v168 = vpop.f32.mrf.mxu0
    %v169 = vadd.f32 0.0, %v168
    %170 = vdwg.mxu0
    %v171 = vadd.f32 %v150, %v169
    %v172 = vtanh.pop %v171
    %173 = vst [vmem:[#allocation2] sm:$0x1] %v172
    %v174 = vld [vmem:[#allocation2 + $0x1] sm:$0x1]
    %175 = vmatpush.msra.mxu0 %v148
    %176 = vmatpush.msra.mxu0 %v147
    %177 = vmatpush.msra.mxu0 %v146
    %178 = vmatpush.msra.mxu0 %v145
    %179 = vmatpush.msra.mxu0 %v144
    %180 = vmatpush.msra.mxu0 %v143
    %181 = vmatpush.msra.mxu0 %v142
    %182 = vmatpush.msra.mxu0 %v141
    %183 = vmatpush.msra.mxu0 %v140
    %184 = vmatpush.msra.mxu0 %v139
    %185 = vmatpush.msra.mxu0 %v138
    %186 = vmatpush.msra.mxu0 %v137
    %187 = vmatpush.msra.mxu0 %v136
    %188 = vmatpush.msra.mxu0 %v135
    %189 = vmatpush.msra.mxu0 %v134
    %190 = vmatpush.msra.mxu0 %v133
    %191 = vmatmul.f32.gmra.mxu0 %v172
    %v192 = vpop.f32.mrf.mxu0
    %v193 = vadd.f32 0.0, %v192
    %194 = vdwg.mxu0
    %v195 = vadd.f32 %v174, %v193
    %v196 = vtanh.pop %v195
    %197 = vst [vmem:[#allocation2 + $0x1] sm:$0x1] %v196
    %v198 = vld [vmem:[#allocation2 + $0x2] sm:$0x1]
    %199 = vmatpush.msra.mxu0 %v148
    %200 = vmatpush.msra.mxu0 %v147
    %201 = vmatpush.msra.mxu0 %v146
    %202 = vmatpush.msra.mxu0 %v145
    %203 = vmatpush.msra.mxu0 %v144
    %204 = vmatpush.msra.mxu0 %v143
    %205 = vmatpush.msra.mxu0 %v142
    %206 = vmatpush.msra.mxu0 %v141
    %207 = vmatpush.msra.mxu0 %v140
    %208 = vmatpush.msra.mxu0 %v139
    %209 = vmatpush.msra.mxu0 %v138
    %210 = vmatpush.msra.mxu0 %v137
    %211 = vmatpush.msra.mxu0 %v136
    %212 = vmatpush.msra.mxu0 %v135
    %213 = vmatpush.msra.mxu0 %v134
    %214 = vmatpush.msra.mxu0 %v133
    %215 = vmatmul.f32.gmra.mxu0 %v196
    %v216 = vpop.f32.mrf.mxu0
    %v217 = vadd.f32 0.0, %v216
    %218 = vdwg.mxu0
    %v219 = vadd.f32 %v198, %v217
    %v220 = vtanh.pop %v219
    %221 = vst [vmem:[#allocation2 + $0x2] sm:$0x1] %v220
    %v222 = vld [vmem:[#allocation2 + $0x3] sm:$0x1]
    %223 = vmatpush.msra.mxu0 %v148
    %224 = vmatpush.msra.mxu0 %v147
    %225 = vmatpush.msra.mxu0 %v146
    %226 = vmatpush.msra.mxu0 %v145
    %227 = vmatpush.msra.mxu0 %v144
    %228 = vmatpush.msra.mxu0 %v143
    %229 = vmatpush.msra.mxu0 %v142
    %230 = vmatpush.msra.mxu0 %v141
    %231 = vmatpush.msra.mxu0 %v140
    %232 = vmatpush.msra.mxu0 %v139
    %233 = vmatpush.msra.mxu0 %v138
    %234 = vmatpush.msra.mxu0 %v137
    %235 = vmatpush.msra.mxu0 %v136
    %236 = vmatpush.msra.mxu0 %v135
    %237 = vmatpush.msra.mxu0 %v134
    %238 = vmatpush.msra.mxu0 %v133
    %239 = vmatmul.f32.gmra.mxu0 %v220
    %v240 = vpop.f32.mrf.mxu0
    %v241 = vadd.f32 0.0, %v240
    %242 = vdwg.mxu0
    %v243 = vadd.f32 %v222, %v241
    %v244 = vtanh.pop %v243
    %245 = vst [vmem:[#allocation2 + $0x3] sm:$0x1] %v244
    %v246 = vld [vmem:[#allocation2 + $0x4] sm:$0x1]
    %247 = vmatpush.msra.mxu0 %v148
    %248 = vmatpush.msra.mxu0 %v147
    %249 = vmatpush.msra.mxu0 %v146
    %250 = vmatpush.msra.mxu0 %v145
    %251 = vmatpush.msra.mxu0 %v144
    %252 = vmatpush.msra.mxu0 %v143
    %253 = vmatpush.msra.mxu0 %v142
    %254 = vmatpush.msra.mxu0 %v141
    %255 = vmatpush.msra.mxu0 %v140
    %256 = vmatpush.msra.mxu0 %v139
    %257 = vmatpush.msra.mxu0 %v138
    %258 = vmatpush.msra.mxu0 %v137
    %259 = vmatpush.msra.mxu0 %v136
    %260 = vmatpush.msra.mxu0 %v135
    %261 = vmatpush.msra.mxu0 %v134
    %262 = vmatpush.msra.mxu0 %v133
    %263 = vmatmul.f32.gmra.mxu0 %v244
    %v264 = vpop.f32.mrf.mxu0
    %v265 = vadd.f32 0.0, %v264
    %266 = vdwg.mxu0
    %v267 = vadd.f32 %v246, %v265
    %v268 = vtanh.pop %v267
    %269 = vst [vmem:[#allocation2 + $0x4] sm:$0x1] %v268
    %v270 = vld [vmem:[#allocation2 + $0x5] sm:$0x1]
    %271 = vmatpush.msra.mxu0 %v148
    %272 = vmatpush.msra.mxu0 %v147
    %273 = vmatpush.msra.mxu0 %v146
    %274 = vmatpush.msra.mxu0 %v145
    %275 = vmatpush.msra.mxu0 %v144
    %276 = vmatpush.msra.mxu0 %v143
    %277 = vmatpush.msra.mxu0 %v142
    %278 = vmatpush.msra.mxu0 %v141
    %279 = vmatpush.msra.mxu0 %v140
    %280 = vmatpush.msra.mxu0 %v139
    %281 = vmatpush.msra.mxu0 %v138
    %282 = vmatpush.msra.mxu0 %v137
    %283 = vmatpush.msra.mxu0 %v136
    %284 = vmatpush.msra.mxu0 %v135
    %285 = vmatpush.msra.mxu0 %v134
    %286 = vmatpush.msra.mxu0 %v133
    %287 = vmatmul.f32.gmra.mxu0 %v268
    %v288 = vpop.f32.mrf.mxu0
    %v289 = vadd.f32 0.0, %v288
    %290 = vdwg.mxu0
    %v291 = vadd.f32 %v270, %v289
    %v292 = vtanh.pop %v291
    %293 = vst [vmem:[#allocation2 + $0x5] sm:$0x1] %v292
    %v294 = vld [vmem:[#allocation2 + $0x6] sm:$0x1]
    %295 = vmatpush.msra.mxu0 %v148
    %296 = vmatpush.msra.mxu0 %v147
    %297 = vmatpush.msra.mxu0 %v146
    %298 = vmatpush.msra.mxu0 %v145
    %299 = vmatpush.msra.mxu0 %v144
    %300 = vmatpush.msra.mxu0 %v143
    %301 = vmatpush.msra.mxu0 %v142
    %302 = vmatpush.msra.mxu0 %v141
    %303 = vmatpush.msra.mxu0 %v140
    %304 = vmatpush.msra.mxu0 %v139
    %305 = vmatpush.msra.mxu0 %v138
    %306 = vmatpush.msra.mxu0 %v137
    %307 = vmatpush.msra.mxu0 %v136
    %308 = vmatpush.msra.mxu0 %v135
    %309 = vmatpush.msra.mxu0 %v134
    %310 = vmatpush.msra.mxu0 %v133
    %311 = vmatmul.f32.gmra.mxu0 %v292
    %v312 = vpop.f32.mrf.mxu0
    %v313 = vadd.f32 0.0, %v312
    %314 = vdwg.mxu0
    %v315 = vadd.f32 %v294, %v313
    %v316 = vtanh.pop %v315
    %317 = vst [vmem:[#allocation2 + $0x6] sm:$0x1] %v316
    %v318 = vld [vmem:[#allocation2 + $0x7] sm:$0x1]
    %319 = vmatpush.msra.mxu0 %v148
    %320 = vmatpush.msra.mxu0 %v147
    %321 = vmatpush.msra.mxu0 %v146
    %322 = vmatpush.msra.mxu0 %v145
    %323 = vmatpush.msra.mxu0 %v144
    %324 = vmatpush.msra.mxu0 %v143
    %325 = vmatpush.msra.mxu0 %v142
    %326 = vmatpush.msra.mxu0 %v141
    %327 = vmatpush.msra.mxu0 %v140
    %328 = vmatpush.msra.mxu0 %v139
    %329 = vmatpush.msra.mxu0 %v138
    %330 = vmatpush.msra.mxu0 %v137
    %331 = vmatpush.msra.mxu0 %v136
    %332 = vmatpush.msra.mxu0 %v135
    %333 = vmatpush.msra.mxu0 %v134
    %334 = vmatpush.msra.mxu0 %v133
    %335 = vmatmul.f32.gmra.mxu0 %v316
    %v336 = vpop.f32.mrf.mxu0
    %v337 = vadd.f32 0.0, %v336
    %338 = vdwg.mxu0
    %v339 = vadd.f32 %v318, %v337
    %v340 = vtanh.pop %v339
    %341 = vst [vmem:[#allocation2 + $0x7] sm:$0x1] %v340
    %342 = vst [vmem:[#allocation12] sm:$0x1] %v340
    %v343 = vld [vmem:[#allocation2] sm:$0xff]
    %v344 = vld [vmem:[#allocation9] sm:$0xff]
    %v345 = vld [vmem:[#allocation9 + $0x8] sm:$0xff]
    %v346 = vld [vmem:[#allocation9 + $0x10] sm:$0xff]
    %v347 = vld [vmem:[#allocation9 + $0x18] sm:$0xff]
    %v348 = vld [vmem:[#allocation9 + $0x20] sm:$0xff]
    %v349 = vld [vmem:[#allocation9 + $0x28] sm:$0xff]
    %v350 = vld [vmem:[#allocation9 + $0x30] sm:$0xff]
    %v351 = vld [vmem:[#allocation9 + $0x38] sm:$0xff]
    %v352 = vld [vmem:[#allocation9 + $0x40] sm:$0xff]
    %v353 = vld [vmem:[#allocation9 + $0x48] sm:$0xff]
    %v354 = vld [vmem:[#allocation9 + $0x50] sm:$0xff]
    %v355 = vld [vmem:[#allocation9 + $0x58] sm:$0xff]
    %v356 = vld [vmem:[#allocation9 + $0x60] sm:$0xff]
    %v357 = vld [vmem:[#allocation9 + $0x68] sm:$0xff]
    %v358 = vld [vmem:[#allocation9 + $0x70] sm:$0xff]
    %v359 = vld [vmem:[#allocation9 + $0x78] sm:$0xff]
    %v360 = vld [vmem:[%s5] sm:$0x1]
    %v362 = vperm.slane %v360, 0
    %364 = vmatpush.msra.mxu0 %v359
    %365 = vmatpush.msra.mxu0 %v358
    %366 = vmatpush.msra.mxu0 %v357
    %367 = vmatpush.msra.mxu0 %v356
    %368 = vmatpush.msra.mxu0 %v355
    %369 = vmatpush.msra.mxu0 %v354
    %370 = vmatpush.msra.mxu0 %v353
    %371 = vmatpush.msra.mxu0 %v352
    %372 = vmatpush.msra.mxu0 %v351
    %373 = vmatpush.msra.mxu0 %v350
    %374 = vmatpush.msra.mxu0 %v349
    %375 = vmatpush.msra.mxu0 %v348
    %376 = vmatpush.msra.mxu0 %v347
    %377 = vmatpush.msra.mxu0 %v346
    %378 = vmatpush.msra.mxu0 %v345
    %379 = vmatpush.msra.mxu0 %v344
    %380 = vmatmul.f32.gmra.mxu0 %v343
    %v381 = vpop.f32.mrf.mxu0
    %v382 = vadd.f32 %v362, %v381
    %383 = vdwg.mxu0
    %384 = vst [vmem:[#allocation11] sm:$0xff] %v382
    // Predicated region
    $region46: #{tpu_custom_call.1} parent=1 // pred_check
      _
    $region47: #{tpu_custom_call.1} parent=1 // pred_check_branch
      %386 = sbr.rel (0) target = $region49
    $region48: #{tpu_custom_call.1} parent=1 // pred_region
      %388 = vsyncadd [#allocation5], 0
      %s390 = sshll.u32 [#allocation11], 4
      %s391 = int_to_ptr.vmem [resolvable:$true] %s390
      %s392 = sshll.u32 %s7, 4
      %s393 = int_to_ptr.hbm [resolvable:$true] %s392
      %395 = dma.vmem_to_hbm [thread:$0]  %s391, 128, %s393, [#allocation5]
    $region49: #{tpu_custom_call.1} parent=1 // pred_fallthru
      _
    // Predicated region
    $region50: #{tpu_custom_call.1} parent=1 // pred_check
      _
    $region51: #{tpu_custom_call.1} parent=1 // pred_check_branch
      %397 = sbr.rel (0) target = $region53
    $region52: #{tpu_custom_call.1} parent=1 // pred_region
      %399 = vsyncadd [#allocation13], 0
      %s401 = sshll.u32 [#allocation12], 4
      %s402 = int_to_ptr.vmem [resolvable:$true] %s401
      %s403 = sshll.u32 %s8, 4
      %s404 = int_to_ptr.hbm [resolvable:$true] %s403
      %406 = dma.vmem_to_hbm [thread:$0]  %s402, 16, %s404, [#allocation13]
    $region53: #{tpu_custom_call.1} parent=1 // pred_fallthru
      _
    // Predicated region
    $region54: #{tpu_custom_call.1} parent=1 // pred_check
      _
    $region55: #{tpu_custom_call.1} parent=1 // pred_check_branch
      %408 = sbr.rel (0) target = $region57
    $region56: #{tpu_custom_call.1} parent=1 // pred_region
      %410 = dma.done [#allocation5], 128
    $region57: #{tpu_custom_call.1} parent=1 // pred_fallthru
      _
    // Predicated region
    $region58: #{tpu_custom_call.1} parent=1 // pred_check
      _
    $region59: #{tpu_custom_call.1} parent=1 // pred_check_branch
      %412 = sbr.rel (0) target = $region61
    $region60: #{tpu_custom_call.1} parent=1 // pred_region
      %414 = dma.done [#allocation13], 16
    $region61: #{tpu_custom_call.1} parent=1 // pred_fallthru
      _
    %415 = vsyncpa [#allocation4], 1
    %416 = vsyncpa [#allocation7], 1
    %417 = vsyncpa [#allocation10], 1
    %418 = vsyncpa [#allocation5], 1
    %419 = vsyncpa [#allocation13], 1

</llo_original>
